<compile_context>
chip_gen: v7x
topology: tpu7x:2x2x1
jax: 0.10.0
libtpu: 0.0.40
codegen_flags: <defaults>
</compile_context>

<pallas_src>
import functools

import jax
import jax.numpy as jnp
from jax.experimental import pallas as pl
from jax.experimental.pallas import tpu as pltpu


# ------------------------------ kernels -------------------------------------


def _l2norm_kernel(x_ref, o_ref, *, eps):
    # Reduction over the feature axis (last axis == TPU lane axis).
    x = x_ref[...].astype(jnp.float32)
    sq_sum = jnp.sum(x * x, axis=-1, keepdims=True)        # [tm, 1]  (XLU)
    inv = jax.lax.rsqrt(sq_sum + eps)                       # EUP slot
    o_ref[...] = (x * inv).astype(o_ref.dtype)


def _l2norm_packed_kernel(x_ref, seg_ref, o_ref, *, eps):
    # Lane-dense variant for D < 128: k = 128 // D rows packed into one 128-wide
    # row by the wrapper. Per-segment sums via one small MXU matmul against a
    # precomputed block-diagonal ones matrix (resident, fetched once).
    x = x_ref[...].astype(jnp.float32)                      # [tm, 128]
    sq_sum = jnp.dot(x * x, seg_ref[...],
                     preferred_element_type=jnp.float32,
                     precision=jax.lax.Precision.HIGHEST)   # [tm, 128]
    inv = jax.lax.rsqrt(sq_sum + eps)
    o_ref[...] = (x * inv).astype(o_ref.dtype)


# ------------------------------ sizing ---------------------------------------

_PALLAS_MIN_BYTES = 1 << 20     # below this, let XLA fuse the normalize


def _round_up(x, m):
    return -(-x // m) * m


def _vmem_limits():
    """Per-generation scoped-VMEM limit and tile budget (bytes)."""
    cap = None
    try:
        info = pltpu.get_tpu_info()
        cap = getattr(info, "vmem_capacity_bytes", None)
    except Exception:
        cap = None
    if cap is None:
        cap = 64 << 20                       # conservative: v7x per-TC VMEM
    if cap >= (100 << 20):                   # v5e / v6e: 128 MiB physical
        limit = 96 << 20
    else:                                    # v7x: 64 MiB per TC
        limit = 48 << 20
    budget = limit - (8 << 20)               # headroom for compiler scratch
    return limit, budget


def _choose_block_rows(n_rows, d, itemsize, tile_budget):
    # Per-row VMEM: 2 pipeline buffers x (in + out) tile in input dtype, plus
    # ~2 f32-upcast temporaries for the tile currently being computed.
    bytes_per_row = (4 * itemsize + 8) * d
    rows = max(tile_budget // max(bytes_per_row, 1), 8)
    n8 = _round_up(max(n_rows, 1), 8)
    rows = min(rows, n8)
    # If everything fits in one step but the problem is large enough to care,
    # split into 2 balanced steps so both v7x TensorCores get work.
    if rows >= n8 and n8 >= 16 and n8 * d * itemsize > (2 << 20):
        rows = _round_up(-(-n8 // 2), 8)
    rows = max(8, (rows // 8) * 8)
    return int(rows)


# ------------------------------ pallas_call wrappers --------------------------


def _run_unpacked(x, eps, block_rows, vmem_limit):
    n, d = x.shape
    return pl.pallas_call(
        functools.partial(_l2norm_kernel, eps=eps),
        out_shape=jax.ShapeDtypeStruct((n, d), x.dtype),
        grid_spec=pl.GridSpec(
            grid=(pl.cdiv(n, block_rows),),
            in_specs=[pl.BlockSpec((block_rows, d), lambda i: (i, 0))],
            out_specs=pl.BlockSpec((block_rows, d), lambda i: (i, 0)),
        ),
        compiler_params=pltpu.CompilerParams(
            dimension_semantics=("parallel",),
            vmem_limit_bytes=vmem_limit,
        ),
    )(x)


def _run_packed(xp, seg_mat, eps, block_rows, vmem_limit):
    n, kd = xp.shape                          # kd == 128
    return pl.pallas_call(
        functools.partial(_l2norm_packed_kernel, eps=eps),
        out_shape=jax.ShapeDtypeStruct((n, kd), xp.dtype),
        grid_spec=pl.GridSpec(
            grid=(pl.cdiv(n, block_rows),),
            in_specs=[
                pl.BlockSpec((block_rows, kd), lambda i: (i, 0)),
                pl.BlockSpec((kd, kd), lambda i: (0, 0)),   # resident, fetched once
            ],
            out_specs=pl.BlockSpec((block_rows, kd), lambda i: (i, 0)),
        ),
        compiler_params=pltpu.CompilerParams(
            dimension_semantics=("parallel",),
            vmem_limit_bytes=vmem_limit,
        ),
    )(xp, seg_mat)


# ------------------------------ public API ------------------------------------


def l2norm(x, eps=1e-10, use_pallas=None):
    """x: [N, D] -> [N, D], L2-normalized along D (PyTorch dim=1)."""
    n, d = x.shape
    itemsize = jnp.dtype(x.dtype).itemsize
    if use_pallas is None:
        use_pallas = n * d * itemsize >= _PALLAS_MIN_BYTES
    if not use_pallas:
        # Tiny (module-sized) input: let XLA fuse into the pooling epilogue.
        xf = x.astype(jnp.float32)
        inv = jax.lax.rsqrt(jnp.sum(xf * xf, axis=1, keepdims=True) + eps)
        return (xf * inv).astype(x.dtype)

    vmem_limit, tile_budget = _vmem_limits()

    # Lane-dense repack when D < 128: fold k = 128 // D rows into one 128-wide
    # row so every load/store uses the full lane width (no masked vst.msk).
    if d < 128 and 128 % d == 0:
        k = 128 // d
        n_pad = _round_up(n, k)
        xp = x if n_pad == n else jnp.pad(x, ((0, n_pad - n), (0, 0)))
        xp = xp.reshape(n_pad // k, k * d)
        seg_idx = jnp.arange(k * d, dtype=jnp.int32) // d
        seg_mat = (seg_idx[:, None] == seg_idx[None, :]).astype(jnp.float32)
        block_rows = _choose_block_rows(n_pad // k, k * d, itemsize, tile_budget)
        out = _run_packed(xp, seg_mat, eps, block_rows, vmem_limit)
        out = out.reshape(n_pad, d)
        return out if n_pad == n else out[:n]

    block_rows = _choose_block_rows(n, d, itemsize, tile_budget)
    return _run_unpacked(x, eps, block_rows, vmem_limit)


def l2norm_ref(x, eps=1e-10):
    x = x.astype(jnp.float32)
    norm = jnp.sqrt(jnp.sum(x * x, axis=1, keepdims=True) + eps)
    return x / norm


# ------------------------------ self-test -------------------------------------

if __name__ == "__main__":
    key = jax.random.PRNGKey(0)
    k1, k2, k3, k4, k5 = jax.random.split(key, 5)

    # Module default feat_dim=256 (lane-dense), small batch; force Pallas path.
    x256 = jax.random.normal(k1, (8, 256), dtype=jnp.float32)
    out256 = jax.block_until_ready(l2norm(x256, use_pallas=True))
    assert out256.shape == x256.shape and out256.dtype == x256.dtype
    assert jnp.allclose(out256, l2norm_ref(x256), atol=1e-5, rtol=1e-5)

    # Ragged N (not a multiple of 8): exercises the no-pad partial last block.
    xrag = jax.random.normal(k2, (10, 256), dtype=jnp.float32)
    outrag = jax.block_until_ready(l2norm(xrag, use_pallas=True))
    assert outrag.shape == xrag.shape
    assert jnp.allclose(outrag, l2norm_ref(xrag), atol=1e-5, rtol=1e-5)

    # Narrow-feature (D=32 < 128) with N % (128//D) != 0: lane-dense packed
    # path with a tiny wrapper-side row pad.
    x32 = jax.random.normal(k3, (10, 32), dtype=jnp.float32)
    out32 = jax.block_until_ready(l2norm(x32, use_pallas=True))
    assert out32.shape == x32.shape and out32.dtype == x32.dtype
    assert jnp.allclose(out32, l2norm_ref(x32), atol=1e-4, rtol=1e-4)

    # bf16 stays bf16 in HBM; f32 upcast only inside the kernel.
    xb = jax.random.normal(k4, (8, 256), dtype=jnp.float32).astype(jnp.bfloat16)
    outb = jax.block_until_ready(l2norm(xb, use_pallas=True))
    assert outb.shape == xb.shape and outb.dtype == jnp.bfloat16
    assert jnp.allclose(outb.astype(jnp.float32), l2norm_ref(xb),
                        atol=2e-2, rtol=2e-2)

    # Default (auto) path for a module-sized tiny input: XLA fallback.
    xtiny = jax.random.normal(k5, (2, 256), dtype=jnp.float32)
    outtiny = jax.block_until_ready(l2norm(xtiny))
    assert jnp.allclose(outtiny, l2norm_ref(xtiny), atol=1e-5, rtol=1e-5)

    print("KERNEL_OK")
</pallas_src>

<mosaic_0001>
module attributes {stable_mosaic.version = 11 : i64} {
  func.func @_l2norm_kernel(%arg0: i32, %arg1: memref<8x256xf32, #tpu.memory_space<vmem>>, %arg2: memref<8x256xf32, #tpu.memory_space<vmem>>) attributes {dimension_semantics = [#tpu.dimension_semantics<parallel>], iteration_bounds = array<i64: 1>, scalar_prefetch = 0 : i64, scratch_operands = 0 : i64, tpu.core_type = #tpu.core_type<tc>, window_params = [{transform_indices = @transform_0, window_bounds = array<i64: 8, 256>}, {transform_indices = @transform_1, window_bounds = array<i64: 8, 256>}]} {
    %c0 = arith.constant 0 : index
    %c0_0 = arith.constant 0 : index
    %0 = vector.load %arg1[%c0, %c0_0] : memref<8x256xf32, #tpu.memory_space<vmem>>, vector<8x256xf32>
    %1 = arith.mulf %0, %0 : vector<8x256xf32>
    %cst = arith.constant dense<0.000000e+00> : vector<8xf32>
    %2 = vector.multi_reduction <add>, %1, %cst [1] : vector<8x256xf32> to vector<8xf32>
    %3 = vector.shape_cast %2 : vector<8xf32> to vector<8x1xf32>
    %cst_1 = arith.constant 1.000000e-10 : f32
    %4 = vector.broadcast %cst_1 : f32 to vector<8x1xf32>
    %5 = arith.addf %3, %4 : vector<8x1xf32>
    %6 = math.rsqrt %5 : vector<8x1xf32>
    %7 = vector.broadcast %6 : vector<8x1xf32> to vector<8x256xf32>
    %8 = arith.mulf %0, %7 : vector<8x256xf32>
    %c0_2 = arith.constant 0 : index
    %c0_3 = arith.constant 0 : index
    %9 = vector.load %arg2[%c0_2, %c0_3] : memref<8x256xf32, #tpu.memory_space<vmem>>, vector<8x256xf32>
    tpu.vector_store %arg2[%c0_2, %c0_3], %8 {strides = array<i32>} : memref<8x256xf32, #tpu.memory_space<vmem>>, vector<8x256xf32>,
    return
  }
  func.func @transform_0(%arg0: i32) -> (i32, i32) {
    %c0_i32 = arith.constant 0 : i32
    %c0_i32_0 = arith.constant 0 : i32
    return %arg0, %c0_i32 : i32, i32
  }
  func.func @transform_1(%arg0: i32) -> (i32, i32) {
    %c0_i32 = arith.constant 0 : i32
    %c0_i32_0 = arith.constant 0 : i32
    return %arg0, %c0_i32 : i32, i32
  }
}

</mosaic_0001>

<llo_original>
// kernel: tpu_custom_call.1
$region0: #{tpu_custom_call.1}
  #allocation0 [shape = 'u32[]', space=smem, size = 0x4, offset = 0x4, fixed_abs, tag = 'smem constant byte address 0x4 - core index']
  #allocation1 [shape = 'u32[144,128]{1,0:T(1,128)}', space=vmem, size = 0x12000, scoped, tag = 'internal scratch']
  %s0 = inlined_call_operand.hbm [shape: f32[8,256], index: 0, kind: input, shape index: {}]
  %s1 = inlined_call_operand.hbm [shape: f32[8,256], index: 1, kind: output, shape index: {}]
  %s2 = sld [smem:[#allocation0]]
  $region18: #{tpu_custom_call.1} parent=0
    _
  %s4 = ssub.s32 1, %s2
  %s5 = scalar_select 0, %s4, %s2
  $region1: #{tpu_custom_call.1} parent=0
    #allocation2 [shape = 'u8[8192]{0}', space=vmem, size = 0x2000, scoped, tag = 'input window, operand 0, single buffered']
    #allocation3 [shape = 's32[1]{0}', space=sflag, size = 0x4, scoped, tag = 'scoped memory for tpu_custom_call.1']
    #allocation4 [shape = 's32[1]{0}', space=sflag, size = 0x4, scoped, tag = 'scoped memory for tpu_custom_call.1']
    #allocation5 [shape = 'u8[8192]{0}', space=vmem, size = 0x2000, scoped, tag = 'output window, operand 0, single buffered']
    %6 = vsyncpa [#allocation3], 0
    %7 = vsyncpa [#allocation4], 0
    // Predicated region
    $region2: #{tpu_custom_call.1} parent=1 // pred_check
      _
    $region3: #{tpu_custom_call.1} parent=1 // pred_check_branch
      %9 = sbr.rel (0) target = $region5
    $region4: #{tpu_custom_call.1} parent=1 // pred_region
      %s11 = ssub.s32 256, 256
      %12 = vsyncadd [#allocation3], %s11
      %s14 = sshll.u32 [#allocation2], 4
      %s15 = int_to_ptr.vmem [resolvable:$true] %s14
      %17 = dma.hbm_to_vmem [thread:$0]  %s0, 256, %s15, [#allocation3]
    $region5: #{tpu_custom_call.1} parent=1 // pred_fallthru
      _
    // Predicated region
    $region6: #{tpu_custom_call.1} parent=1 // pred_check
      _
    $region7: #{tpu_custom_call.1} parent=1 // pred_check_branch
      %19 = sbr.rel (0) target = $region9
    $region8: #{tpu_custom_call.1} parent=1 // pred_region
      %20 = dma.done [#allocation3], 256
    $region9: #{tpu_custom_call.1} parent=1 // pred_fallthru
      _
    %v21 = vld [vmem:[#allocation2] sm:$0xff]
    %v22 = vld [vmem:[#allocation2 + $0x8] sm:$0xff]
    %v23 = vmul.f32 %v21, %v21
    %v24 = vmul.f32 %v22, %v22
    %v25 = vadd.f32 %v23, %v24
    %26 = vadd.xlane.f32.xlu0 %v25
    %v27 = vpop.xlane.xlu0 %26
    %v28 = vadd.f32 %v27, 1e-10
    %v29 = vrsqrt.pop %v28
    %v30 = vmul.f32 %v21, %v29
    %v31 = vmul.f32 %v22, %v29
    %32 = vst [vmem:[#allocation5] sm:$0xff] %v30
    %33 = vst [vmem:[#allocation5 + $0x8] sm:$0xff] %v31
    // Predicated region
    $region10: #{tpu_custom_call.1} parent=1 // pred_check
      _
    $region11: #{tpu_custom_call.1} parent=1 // pred_check_branch
      %35 = sbr.rel (0) target = $region13
    $region12: #{tpu_custom_call.1} parent=1 // pred_region
      %s37 = ssub.s32 256, 256
      %38 = vsyncadd [#allocation4], %s37
      %s40 = sshll.u32 [#allocation5], 4
      %s41 = int_to_ptr.vmem [resolvable:$true] %s40
      %43 = dma.vmem_to_hbm [thread:$0]  %s41, 256, %s1, [#allocation4]
    $region13: #{tpu_custom_call.1} parent=1 // pred_fallthru
      _
    // Predicated region
    $region14: #{tpu_custom_call.1} parent=1 // pred_check
      _
    $region15: #{tpu_custom_call.1} parent=1 // pred_check_branch
      %45 = sbr.rel (0) target = $region17
    $region16: #{tpu_custom_call.1} parent=1 // pred_region
      %46 = dma.done [#allocation4], 256
    $region17: #{tpu_custom_call.1} parent=1 // pred_fallthru
      _
    %47 = vsyncpa [#allocation3], 1
    %48 = vsyncpa [#allocation4], 1

</llo_original>
